<compile_context>
chip_gen: v5e
topology: v5e:2x2
jax: 0.10.0
libtpu: 0.0.40
codegen_flags: <defaults>
</compile_context>

<pallas_src>
import numpy as np
import jax
import jax.numpy as jnp
from jax import lax
from jax.experimental import pallas as pl
from jax.experimental.pallas import tpu as pltpu


# ---------------------------------------------------------------------------
# Kernel: one matmul produces all branches, all quadrants, bias included.
# ---------------------------------------------------------------------------
def _fused_deconv_kernel(xcol_ref, wT_ref, out_ref):
    # xcol_ref : (9*IC + 1, PX_TILE)  im2col slab + ones row, pixels on lanes
    # wT_ref   : (3*4*OC, 9*IC + 1)   fused weight, BN scale folded in, last col = shift
    # out_ref  : (3*4*OC, PX_TILE)    lane-dense output
    y = jnp.dot(wT_ref[...], xcol_ref[...], preferred_element_type=jnp.float32)
    out_ref[...] = jnp.maximum(y, 0.0).astype(out_ref.dtype)


# ---------------------------------------------------------------------------
# Host-side parameter prep (numpy): fold the 3 branches, 4 quadrants, 4 taps,
# eval-BN scale AND the bias/shift into a single weight matrix.
# ---------------------------------------------------------------------------
def build_fused_params(w_pt, scale, shift):
    """w_pt: (3, IC, OC, 4, 4) torch ConvTranspose2d layout; scale/shift: (3, OC).

    Returns:
      wT : (3*4*OC, 9*IC + 1)  row = (br*4 + 2a + b)*OC + oc,
                               col = (3*i0 + j0)*IC + ic, last col = per-channel shift.
    """
    w = np.asarray(w_pt, np.float32)
    sc = np.asarray(scale, np.float32)
    sh = np.asarray(shift, np.float32)
    nb, ic, oc, _, _ = w.shape
    tot = nb * 4 * oc
    wT = np.zeros((tot, 9 * ic + 1), np.float32)
    for br in range(nb):
        w_br = w[br] * sc[br][None, :, None, None]           # fold BN scale (IC, OC, 4, 4)
        for a in range(2):
            for b in range(2):
                row0 = (br * 4 + a * 2 + b) * oc
                for dh in range(2):
                    for dw in range(2):
                        kh, kw = 3 - a - 2 * dh, 3 - b - 2 * dw
                        s = (a + dh) * 3 + (b + dw)           # shift index into im2col
                        wT[row0:row0 + oc, s * ic:(s + 1) * ic] = w_br[:, :, kh, kw].T
                wT[row0:row0 + oc, -1] = sh[br]               # bias folded via ones-row
    return jnp.asarray(wT)


def _pick_px_tile(np_total, rows_in, rows_out,
                  max_tile=8192, vmem_budget_bytes=12 * 1024 * 1024):
    """Largest lane-aligned pixel tile that (a) fits a conservative double-buffered
    VMEM budget, (b) does not exceed max_tile, and (c) leaves >= 2 grid steps so the
    v7x megacore 'parallel' axis can shard (free on 1-TC v5e/v6e)."""
    bytes_per_px = 4 * (rows_in + rows_out) * 2               # f32 in+out, double-buffered
    budget_tile = max(128, (vmem_budget_bytes // bytes_per_px) // 128 * 128)
    half = max(128, (((np_total + 1) // 2) + 127) // 128 * 128)
    return max(128, min(max_tile, budget_tile, half))


# ---------------------------------------------------------------------------
# Wrapper: im2col (single materialization), single pallas_call, NCHW interleave.
# ---------------------------------------------------------------------------
def inception_deconv_pallas(x_nchw, wT, num_branches=3):
    N, IC, H, W = x_nchw.shape
    tot, K1 = wT.shape
    OC = tot // (num_branches * 4)
    NP = N * H * W
    assert K1 == 9 * IC + 1

    # im2col: channel-major transpose FIRST, then the 9 shifted windows of the
    # 1-zero-padded input, so jnp.stack already yields the final (9*IC, NP) row order
    # (no extra full-slab transpose in XLA).
    x_pad = jnp.pad(jnp.transpose(x_nchw, (1, 0, 2, 3)),
                    ((0, 0), (0, 0), (1, 1), (1, 1)))                # (IC, N, H+2, W+2)
    wins = [x_pad[:, :, i0:i0 + H, j0:j0 + W]
            for i0 in range(3) for j0 in range(3)]                    # 9 x (IC, N, H, W)
    x_col = jnp.stack(wins, axis=0).reshape(9 * IC, NP)              # (9*IC, N*H*W)
    x_col = jnp.concatenate(
        [x_col, jnp.ones((1, NP), x_col.dtype)], axis=0)             # bias row -> (K1, NP)

    # Large lane-aligned tiles; pad NP up to a tile multiple instead of divisor search.
    px_tile = _pick_px_tile(NP, K1, tot)
    n_tiles = pl.cdiv(NP, px_tile)
    np_pad = n_tiles * px_tile
    if np_pad > NP:
        x_col = jnp.pad(x_col, ((0, 0), (0, np_pad - NP)))

    y = pl.pallas_call(
        _fused_deconv_kernel,
        out_shape=jax.ShapeDtypeStruct((tot, np_pad), jnp.float32),
        grid=(n_tiles,),
        in_specs=[
            pl.BlockSpec((K1, px_tile), lambda p: (0, p)),
            pl.BlockSpec((tot, K1), lambda p: (0, 0)),
        ],
        out_specs=pl.BlockSpec((tot, px_tile), lambda p: (0, p)),
        compiler_params=pltpu.CompilerParams(
            dimension_semantics=("parallel",),
            vmem_limit_bytes=48 * 1024 * 1024),
    )(x_col, wT)

    # (3*4*OC, NP) -> PyTorch-style NCHW concat, with a single interleave transpose.
    # (Downstream consumers that accept the quadrant-planar layout can skip this.)
    y = y[:, :NP].reshape(num_branches, 2, 2, OC, N, H, W)   # [br, a, b, oc, n, i, j]
    y = jnp.transpose(y, (4, 0, 3, 5, 1, 6, 2))              # [n, br, oc, i, a, j, b]
    return y.reshape(N, num_branches * OC, 2 * H, 2 * W)


# ---------------------------------------------------------------------------
# Pure-JAX reference (ConvTranspose2d == lhs-dilated conv with flipped kernel).
# ---------------------------------------------------------------------------
def inception_deconv_reference(x_nchw, w_pt, scale, shift):
    N, IC, H, W = x_nchw.shape
    OC = w_pt.shape[2]
    x_nhwc = jnp.transpose(x_nchw, (0, 2, 3, 1))
    outs = []
    for br in range(3):
        w = w_pt[br]                                                   # (IC, OC, 4, 4)
        w_hwio = jnp.transpose(w[:, :, ::-1, ::-1], (2, 3, 0, 1))
        y = lax.conv_general_dilated(
            x_nhwc, w_hwio, window_strides=(1, 1), padding=((2, 2), (2, 2)),
            lhs_dilation=(2, 2), dimension_numbers=("NHWC", "HWIO", "NHWC"))
        y = y * scale[br].reshape(1, 1, 1, OC) + shift[br].reshape(1, 1, 1, OC)
        y = jnp.maximum(y, 0.0)
        outs.append(jnp.transpose(y, (0, 3, 1, 2)))
    return jnp.concatenate(outs, axis=1)


if __name__ == "__main__":
    N, IC, OC, H, W = 2, 4, 4, 16, 16

    key = jax.random.PRNGKey(0)
    k_x, k_w, k_b, k_g, k_beta = jax.random.split(key, 5)

    x = jax.random.normal(k_x, (N, IC, H, W), jnp.float32)

    # Deterministic "xavier-ish" parameters for the 3 branches (torch layout).
    w_pt = jax.random.normal(k_w, (3, IC, OC, 4, 4), jnp.float32) * 0.15
    conv_bias = jax.random.normal(k_b, (3, OC), jnp.float32) * 0.05
    gamma = 1.0 + 0.1 * jax.random.normal(k_g, (3, OC), jnp.float32)
    beta = 0.1 * jax.random.normal(k_beta, (3, OC), jnp.float32)
    running_mean = jnp.zeros((3, OC), jnp.float32)
    running_var = jnp.ones((3, OC), jnp.float32)
    eps = 1e-5

    # Fold conv bias + eval-mode BatchNorm into a per-channel affine.
    scale = gamma / jnp.sqrt(running_var + eps)                # (3, OC)
    shift = (conv_bias - running_mean) * scale + beta          # (3, OC)

    # Host-side fuse: branches/quadrants/taps + BN scale + bias -> one weight matrix.
    wT = build_fused_params(w_pt, scale, shift)

    out = inception_deconv_pallas(x, wT)
    out = jax.block_until_ready(out)

    ref = inception_deconv_reference(x, w_pt, scale, shift)
    assert out.shape == (N, 3 * OC, 2 * H, 2 * W), out.shape
    assert jnp.allclose(out, ref, atol=1e-4, rtol=1e-4), \
        float(jnp.max(jnp.abs(out - ref)))

    print("KERNEL_OK")
</pallas_src>

<mosaic_0001>
module attributes {stable_mosaic.version = 11 : i64} {
  func.func @_fused_deconv_kernel(%arg0: i32, %arg1: memref<37x256xf32, #tpu.memory_space<vmem>>, %arg2: memref<48x37xf32, #tpu.memory_space<vmem>>, %arg3: memref<48x256xf32, #tpu.memory_space<vmem>>) attributes {dimension_semantics = [#tpu.dimension_semantics<parallel>], iteration_bounds = array<i64: 2>, scalar_prefetch = 0 : i64, scratch_operands = 0 : i64, tpu.core_type = #tpu.core_type<tc>, window_params = [{transform_indices = @transform_0, window_bounds = array<i64: 37, 256>}, {pipeline_mode = #tpu.pipeline_mode<synchronous>, transform_indices = @transform_1, window_bounds = array<i64: 48, 37>}, {transform_indices = @transform_2, window_bounds = array<i64: 48, 256>}]} {
    %c0 = arith.constant 0 : index
    %c0_0 = arith.constant 0 : index
    %0 = vector.load %arg2[%c0, %c0_0] : memref<48x37xf32, #tpu.memory_space<vmem>>, vector<48x37xf32>
    %c0_1 = arith.constant 0 : index
    %c0_2 = arith.constant 0 : index
    %1 = vector.load %arg1[%c0_1, %c0_2] : memref<37x256xf32, #tpu.memory_space<vmem>>, vector<37x256xf32>
    %cst = arith.constant dense<0.000000e+00> : vector<48x256xf32>
    %2 = tpu.matmul %0, %1, %cst {dimension_numbers = #tpu.dot_dimension_numbers<[1], [0], [0], [1], [0, 0, 1, 1], [], []>} : vector<48x37xf32>, vector<37x256xf32>, vector<48x256xf32> -> vector<48x256xf32>
    %cst_3 = arith.constant 0.000000e+00 : f32
    %3 = vector.broadcast %cst_3 : f32 to vector<48x256xf32>
    %4 = arith.maximumf %2, %3 : vector<48x256xf32>
    %c0_4 = arith.constant 0 : index
    %c0_5 = arith.constant 0 : index
    %5 = vector.load %arg3[%c0_4, %c0_5] : memref<48x256xf32, #tpu.memory_space<vmem>>, vector<48x256xf32>
    tpu.vector_store %arg3[%c0_4, %c0_5], %4 {strides = array<i32>} : memref<48x256xf32, #tpu.memory_space<vmem>>, vector<48x256xf32>,
    return
  }
  func.func @transform_0(%arg0: i32) -> (i32, i32) {
    %c0_i32 = arith.constant 0 : i32
    %c0_i32_0 = arith.constant 0 : i32
    return %c0_i32, %arg0 : i32, i32
  }
  func.func @transform_1(%arg0: i32) -> (i32, i32) {
    %c0_i32 = arith.constant 0 : i32
    %c0_i32_0 = arith.constant 0 : i32
    %c0_i32_1 = arith.constant 0 : i32
    return %c0_i32, %c0_i32_0 : i32, i32
  }
  func.func @transform_2(%arg0: i32) -> (i32, i32) {
    %c0_i32 = arith.constant 0 : i32
    %c0_i32_0 = arith.constant 0 : i32
    return %c0_i32, %arg0 : i32, i32
  }
}

</mosaic_0001>

<llo_original>
// kernel: tpu_custom_call.1
$region0: #{tpu_custom_call.1}
  #allocation0 [shape = 'u32[]', space=smem, size = 0x4, offset = 0x4, fixed_abs, tag = 'smem constant byte address 0x4 - core index']
  #allocation1 [shape = 'u32[72,128]{1,0:T(1,128)}', space=vmem, size = 0x9000, scoped, tag = 'internal scratch']
  %s0 = inlined_call_operand.hbm [shape: f32[37,512], index: 0, kind: input, shape index: {}]
  %s1 = inlined_call_operand.vmem [shape: f32[48,37], index: 1, kind: input, shape index: {}]
  %s2 = inlined_call_operand.hbm [shape: f32[48,512], index: 2, kind: output, shape index: {}]
  %s3 = sld [smem:[#allocation0]]
  $region45: #{tpu_custom_call.1} parent=0
    _
  %s5 = ssub.s32 1, %s3
  %s6 = scalar_select 0, %s5, %s3
  $region1: #{tpu_custom_call.1} parent=0
    #allocation2 [shape = 'u8[81920]{0}', space=vmem, size = 0x14000, scoped, tag = 'input window, operand 0']
    #allocation3 [shape = 's32[2]{0}', space=sflag, size = 0x8, scoped, tag = 'scoped memory for tpu_custom_call.1']
    #allocation4 [shape = 's32[2]{0}', space=sflag, size = 0x8, scoped, tag = 'scoped memory for tpu_custom_call.1']
    #allocation5 [shape = 'u8[98304]{0}', space=vmem, size = 0x18000, scoped, tag = 'output window, operand 0']
    %7 = vsyncpa [#allocation3], 0
    %s8 = scalar_lea.sflag [#allocation3], 1
    %9 = vsyncpa %s8, 0
    %10 = vsyncpa [#allocation4], 0
    %s11 = scalar_lea.sflag [#allocation4], 1
    %12 = vsyncpa %s11, 0
    loop: start=0, step=1, limit=4
    $region2: #{tpu_custom_call.1} parent=1 // loop_pre_header
      _
    $region3: #{tpu_custom_call.1} parent=1 // loop_header
      %s14 = sphi 0, %s18
      %p15 = scmp.ge.s32.totalorder %s14, 4
      %s24 = sphi 0, %s26
      %s27 = sphi 0, %s24
      %s28 = sphi 0, %s27
      %s44 = sphi 0, %s28
      %s48 = sphi 0, %s48
      %s50 = sphi 0, %s48
      %s51 = sphi 0, %s50
      %s65 = sphi 0, %s51
      %s71 = sphi 0, %s73
      %s74 = sphi 0, %s71
      %s75 = sphi 0, %s74
      %s91 = sphi 0, %s75
    $region4: #{tpu_custom_call.1} parent=1 // loop_header_branch
      %17 = sbr.rel (%p15) target = $region8
    $region5: #{tpu_custom_call.1} parent=1 // loop_body
      %s19 = ssub.s32 %s14, 1
      %s20 = ssub.s32 %s14, 2
      %s21 = sadd.s32 %s14, 1
      %s22 = ssub.s32 %s14, %s21
      %p23 = scmp.eq.s32.totalorder %s22, 0
      %s25 = sadd.s32 %s24, 1
      %s26 = scalar_select %p23, %s24, %s25
      %p29 = pneg %p23
      %p30 = scmp.eq.s32.totalorder %s14, 1
      %p31 = por %p29, %p30
      %p32 = scmp.ne.s32.totalorder %s24, %s27
      %p33 = scmp.eq.s32.totalorder %s14, 0
      %p34 = por %p32, %p33
      %p35 = scmp.ne.s32.totalorder %s24, %s27
      %p36 = scmp.eq.s32.totalorder %s19, 1
      %p37 = por %p35, %p36
      %p38 = scmp.ne.s32.totalorder %s27, %s28
      %p39 = scmp.eq.s32.totalorder %s19, 0
      %p40 = por %p38, %p39
      %p41 = scmp.ne.s32.totalorder %s27, %s28
      %p42 = scmp.eq.s32.totalorder %s20, 1
      %p43 = por %p41, %p42
      %p45 = scmp.ne.s32.totalorder %s28, %s44
      %p46 = scmp.eq.s32.totalorder %s20, 0
      %p47 = por %p45, %p46
      %s49 = sadd.s32 %s48, 1
      %p52 = scmp.eq.s32.totalorder %s14, 1
      %p53 = scmp.ne.s32.totalorder %s48, %s50
      %p54 = scmp.eq.s32.totalorder %s14, 0
      %p55 = por %p53, %p54
      %p56 = scmp.ne.s32.totalorder %s48, %s50
      %p57 = scmp.eq.s32.totalorder %s19, 1
      %p58 = por %p56, %p57
      %p59 = scmp.ne.s32.totalorder %s50, %s51
      %p60 = scmp.eq.s32.totalorder %s19, 0
      %p61 = por %p59, %p60
      %p62 = scmp.ne.s32.totalorder %s50, %s51
      %p63 = scmp.eq.s32.totalorder %s20, 1
      %p64 = por %p62, %p63
      %p66 = scmp.ne.s32.totalorder %s51, %s65
      %p67 = scmp.eq.s32.totalorder %s20, 0
      %p68 = por %p66, %p67
      %s69 = ssub.s32 %s14, %s21
      %p70 = scmp.eq.s32.totalorder %s69, 0
      %s72 = sadd.s32 %s71, 1
      %s73 = scalar_select %p70, %s71, %s72
      %p76 = pneg %p70
      %p77 = scmp.eq.s32.totalorder %s14, 1
      %p78 = por %p76, %p77
      %p79 = scmp.ne.s32.totalorder %s71, %s74
      %p80 = scmp.eq.s32.totalorder %s14, 0
      %p81 = por %p79, %p80
      %p82 = scmp.ne.s32.totalorder %s71, %s74
      %p83 = scmp.eq.s32.totalorder %s19, 1
      %p84 = por %p82, %p83
      %p85 = scmp.ne.s32.totalorder %s74, %s75
      %p86 = scmp.eq.s32.totalorder %s19, 0
      %p87 = por %p85, %p86
      %p88 = scmp.ne.s32.totalorder %s74, %s75
      %p89 = scmp.eq.s32.totalorder %s20, 1
      %p90 = por %p88, %p89
      %p92 = scmp.ne.s32.totalorder %s75, %s91
      %p93 = scmp.eq.s32.totalorder %s20, 0
      %p94 = por %p92, %p93
      %p95 = scmp.le.s32.totalorder 1, %s14
      %p96 = scmp.lt.s32.totalorder %s14, 3
      %p97 = pnand %p95, %p96
      %p98 = pneg %p97
      // Predicated region
      $region9: #{tpu_custom_call.1} parent=5 // pred_check
        _
      $region10: #{tpu_custom_call.1} parent=5 // pred_check_branch
        %100 = sbr.rel (%p97) target = $region12
      $region11: #{tpu_custom_call.1} parent=5 // pred_region
        %s101 = ssub.s32 %s14, 1
        // Predicated region
        $region13: #{tpu_custom_call.1} parent=11 // pred_check
          %p102 = pneg %p61
        $region14: #{tpu_custom_call.1} parent=11 // pred_check_branch
          %104 = sbr.rel (%p102) target = $region16
        $region15: #{tpu_custom_call.1} parent=11 // pred_region
          _
        $region16: #{tpu_custom_call.1} parent=11 // pred_fallthru
          _
      $region12: #{tpu_custom_call.1} parent=5 // pred_fallthru
        _
      %p105 = scmp.lt.s32.totalorder %s14, 2
      // Predicated region
      $region17: #{tpu_custom_call.1} parent=5 // pred_check
        %p106 = pneg %p105
      $region18: #{tpu_custom_call.1} parent=5 // pred_check_branch
        %108 = sbr.rel (%p106) target = $region20
      $region19: #{tpu_custom_call.1} parent=5 // pred_region
        // Predicated region
        $region21: #{tpu_custom_call.1} parent=19 // pred_check
          %p109 = pneg %p34
        $region22: #{tpu_custom_call.1} parent=19 // pred_check_branch
          %111 = sbr.rel (%p109) target = $region24
        $region23: #{tpu_custom_call.1} parent=19 // pred_region
          %s112 = sand.u32 %s24, 1
          %s113 = scalar_lea.sflag [#allocation3], %s112
          %s114 = sand.u32 %s24, 1
          %s115 = smul.addr %s114, 80
          %s116 = scalar_lea.vmem [#allocation2], %s115
          %s117 = smul.u32 2, %s14
          %119 = vsyncadd %s113, 0
          %s120 = smul.addr %s117, 8
          %s121 = scalar_lea.hbm %s0, %s120
          %s122 = sshll.u32 %s121, 4
          %s123 = int_to_ptr.hbm [resolvable:$true] %s122
          %s124 = sshll.u32 %s116, 4
          %s125 = int_to_ptr.vmem [resolvable:$true] %s124
          %130 = dma.hbm_to_vmem [thread:$0]  %s123, 1280, %s125, %s113, 512, 256, 16
        $region24: #{tpu_custom_call.1} parent=19 // pred_fallthru
          _
      $region20: #{tpu_custom_call.1} parent=5 // pred_fallthru
        _
      %p131 = scmp.le.s32.totalorder 1, %s14
      %p132 = scmp.lt.s32.totalorder %s14, 3
      %p133 = pnand %p131, %p132
      %p134 = pneg %p133
      // Predicated region
      $region25: #{tpu_custom_call.1} parent=5 // pred_check
        _
      $region26: #{tpu_custom_call.1} parent=5 // pred_check_branch
        %136 = sbr.rel (%p133) target = $region28
      $region27: #{tpu_custom_call.1} parent=5 // pred_region
        %s137 = ssub.s32 %s14, 1
        %s138 = sand.u32 %s27, 1
        %s139 = scalar_lea.sflag [#allocation3], %s138
        %s140 = sand.u32 %s27, 1
        %s141 = smul.addr %s140, 80
        %s142 = scalar_lea.vmem [#allocation2], %s141
        // Predicated region
        $region29: #{tpu_custom_call.1} parent=27 // pred_check
          %p143 = pneg %p40
        $region30: #{tpu_custom_call.1} parent=27 // pred_check_branch
          %145 = sbr.rel (%p143) target = $region32
        $region31: #{tpu_custom_call.1} parent=27 // pred_region
          %147 = dma.done %s139, 1280
        $region32: #{tpu_custom_call.1} parent=27 // pred_fallthru
          _
        %s148 = sand.u32 %s27, 1
        %s149 = scalar_lea.sflag [#allocation3], %s148
        %s150 = sand.u32 %s27, 1
        %s151 = smul.addr %s150, 80
        %s152 = scalar_lea.vmem [#allocation2], %s151
        %p153 = pneg %p40
        %p154 = pneg %p37
        %p155 = pneg %p61
        %p156 = pneg %p58
        %p157 = pneg %p87
        %p158 = pneg %p84
        %s159 = sand.u32 %s74, 1
        %s160 = scalar_lea.sflag [#allocation4], %s159
        %s161 = sand.u32 %s74, 1
        %s162 = smul.addr %s161, 96
        %s163 = scalar_lea.vmem [#allocation5], %s162
        %s164 = smul.u32 2, %s19
        %s165 = smul.u32 2, %s19
        %v166 = vld [vmem:[%s1] sm:$0xff]
        %v167 = vld [vmem:[%s1 + $0x8] sm:$0xff]
        %v168 = vld [vmem:[%s1 + $0x10] sm:$0xff]
        %v169 = vld [vmem:[%s1 + $0x18] sm:$0xff]
        %v170 = vld [vmem:[%s1 + $0x20] sm:$0xff]
        %v171 = vld [vmem:[%s1 + $0x28] sm:$0xff]
        %v172 = vld [vmem:[%s142] sm:$0xff]
        %v173 = vld [vmem:[%s142 + $0x8] sm:$0xff]
        %v174 = vld [vmem:[%s142 + $0x10] sm:$0xff]
        %v175 = vld [vmem:[%s142 + $0x18] sm:$0xff]
        %v176 = vld [vmem:[%s142 + $0x20] sm:$0xff]
        %v177 = vld [vmem:[%s142 + $0x28] sm:$0xff]
        %v178 = vld [vmem:[%s142 + $0x30] sm:$0xff]
        %v179 = vld [vmem:[%s142 + $0x38] sm:$0xff]
        %v180 = vld [vmem:[%s142 + $0x40] sm:$0x1f]
        %v181 = vld [vmem:[%s142 + $0x48] sm:$0x1f]
        %vm182 = vcmask 302080
        %v184 = vsel %vm182, %v166, 0
        %v187 = vsel %vm182, %v167, 0
        %v190 = vsel %vm182, %v168, 0
        %v193 = vsel %vm182, %v169, 0
        %v196 = vsel %vm182, %v170, 0
        %v199 = vsel %vm182, %v171, 0
        %vm201 = vcmask 1044480
        %v203 = vsel %vm201, %v180, 0
        %v206 = vsel %vm201, %v181, 0
        %208 = vmatpush.msra.mxu0 0.0
        %209 = vmatpush.msra.mxu0 0.0
        %210 = vmatpush.msra.mxu0 0.0
        %211 = vmatpush.msra.mxu0 0.0
        %212 = vmatpush.msra.mxu0 0.0
        %213 = vmatpush.msra.mxu0 0.0
        %214 = vmatpush.msra.mxu0 0.0
        %215 = vmatpush.msra.mxu0 0.0
        %216 = vmatpush.msra.mxu0 0.0
        %217 = vmatpush.msra.mxu0 0.0
        %218 = vmatpush.msra.mxu0 0.0
        %219 = vmatpush.msra.mxu0 %v203
        %220 = vmatpush.msra.mxu0 %v178
        %221 = vmatpush.msra.mxu0 %v176
        %222 = vmatpush.msra.mxu0 %v174
        %223 = vmatpush.msra.mxu0 %v172
        %224 = vmatmul.f32.gmra.mxu0 %v184
        %v225 = vpop.f32.mrf.mxu0
        %v226 = vadd.f32 0.0, %v225
        %227 = vmatmul.f32.gmra.mxu0 %v187
        %v228 = vpop.f32.mrf.mxu0
        %v229 = vadd.f32 0.0, %v228
        %230 = vmatmul.f32.gmra.mxu0 %v190
        %v231 = vpop.f32.mrf.mxu0
        %v232 = vadd.f32 0.0, %v231
        %233 = vmatmul.f32.gmra.mxu0 %v193
        %v234 = vpop.f32.mrf.mxu0
        %v235 = vadd.f32 0.0, %v234
        %236 = vmatmul.f32.gmra.mxu0 %v196
        %v237 = vpop.f32.mrf.mxu0
        %v238 = vadd.f32 0.0, %v237
        %239 = vmatmul.f32.gmra.mxu0 %v199
        %v240 = vpop.f32.mrf.mxu0
        %v241 = vadd.f32 0.0, %v240
        %242 = vdwg.mxu0
        %243 = vmatpush.msra.mxu0 0.0
        %244 = vmatpush.msra.mxu0 0.0
        %245 = vmatpush.msra.mxu0 0.0
        %246 = vmatpush.msra.mxu0 0.0
        %247 = vmatpush.msra.mxu0 0.0
        %248 = vmatpush.msra.mxu0 0.0
        %249 = vmatpush.msra.mxu0 0.0
        %250 = vmatpush.msra.mxu0 0.0
        %251 = vmatpush.msra.mxu0 0.0
        %252 = vmatpush.msra.mxu0 0.0
        %253 = vmatpush.msra.mxu0 0.0
        %254 = vmatpush.msra.mxu0 %v206
        %255 = vmatpush.msra.mxu0 %v179
        %256 = vmatpush.msra.mxu0 %v177
        %257 = vmatpush.msra.mxu0 %v175
        %258 = vmatpush.msra.mxu0 %v173
        %259 = vmatmul.f32.gmra.mxu0 %v184
        %v260 = vpop.f32.mrf.mxu0
        %v261 = vadd.f32 0.0, %v260
        %262 = vmatmul.f32.gmra.mxu0 %v187
        %v263 = vpop.f32.mrf.mxu0
        %v264 = vadd.f32 0.0, %v263
        %265 = vmatmul.f32.gmra.mxu0 %v190
        %v266 = vpop.f32.mrf.mxu0
        %v267 = vadd.f32 0.0, %v266
        %268 = vmatmul.f32.gmra.mxu0 %v193
        %v269 = vpop.f32.mrf.mxu0
        %v270 = vadd.f32 0.0, %v269
        %271 = vmatmul.f32.gmra.mxu0 %v196
        %v272 = vpop.f32.mrf.mxu0
        %v273 = vadd.f32 0.0, %v272
        %274 = vmatmul.f32.gmra.mxu0 %v199
        %v275 = vpop.f32.mrf.mxu0
        %v276 = vadd.f32 0.0, %v275
        %277 = vdwg.mxu0
        %v278 = vmax.f32 %v226, 0.0
        %v279 = vmax.f32 %v261, 0.0
        %v280 = vmax.f32 %v229, 0.0
        %v281 = vmax.f32 %v264, 0.0
        %v282 = vmax.f32 %v232, 0.0
        %v283 = vmax.f32 %v267, 0.0
        %v284 = vmax.f32 %v235, 0.0
        %v285 = vmax.f32 %v270, 0.0
        %v286 = vmax.f32 %v238, 0.0
        %v287 = vmax.f32 %v273, 0.0
        %v288 = vmax.f32 %v241, 0.0
        %v289 = vmax.f32 %v276, 0.0
        %290 = vst [vmem:[%s163] sm:$0xff] %v278
        %291 = vst [vmem:[%s163 + $0x8] sm:$0xff] %v279
        %292 = vst [vmem:[%s163 + $0x10] sm:$0xff] %v280
        %293 = vst [vmem:[%s163 + $0x18] sm:$0xff] %v281
        %294 = vst [vmem:[%s163 + $0x20] sm:$0xff] %v282
        %295 = vst [vmem:[%s163 + $0x28] sm:$0xff] %v283
        %296 = vst [vmem:[%s163 + $0x30] sm:$0xff] %v284
        %297 = vst [vmem:[%s163 + $0x38] sm:$0xff] %v285
        %298 = vst [vmem:[%s163 + $0x40] sm:$0xff] %v286
        %299 = vst [vmem:[%s163 + $0x48] sm:$0xff] %v287
        %300 = vst [vmem:[%s163 + $0x50] sm:$0xff] %v288
        %301 = vst [vmem:[%s163 + $0x58] sm:$0xff] %v289
        %s302 = sand.u32 %s74, 1
        %s303 = scalar_lea.sflag [#allocation4], %s302
        %s304 = sand.u32 %s74, 1
        %s305 = smul.addr %s304, 96
        %s306 = scalar_lea.vmem [#allocation5], %s305
        // Predicated region
        $region33: #{tpu_custom_call.1} parent=27 // pred_check
          %p307 = pneg %p84
        $region34: #{tpu_custom_call.1} parent=27 // pred_check_branch
          %309 = sbr.rel (%p307) target = $region36
        $region35: #{tpu_custom_call.1} parent=27 // pred_region
          %s310 = smul.u32 2, %s19
          %312 = vsyncadd %s303, 0
          %s313 = smul.addr %s310, 8
          %s314 = scalar_lea.hbm %s2, %s313
          %s315 = sshll.u32 %s306, 4
          %s316 = int_to_ptr.vmem [resolvable:$true] %s315
          %s317 = sshll.u32 %s314, 4
          %s318 = int_to_ptr.hbm [resolvable:$true] %s317
          %323 = dma.vmem_to_hbm [thread:$0]  %s316, 1536, %s318, %s303, 256, 512, 16
        $region36: #{tpu_custom_call.1} parent=27 // pred_fallthru
          _
      $region28: #{tpu_custom_call.1} parent=5 // pred_fallthru
        _
      %p324 = scmp.le.s32.totalorder 2, %s14
      // Predicated region
      $region37: #{tpu_custom_call.1} parent=5 // pred_check
        %p325 = pneg %p324
      $region38: #{tpu_custom_call.1} parent=5 // pred_check_branch
        %327 = sbr.rel (%p325) target = $region40
      $region39: #{tpu_custom_call.1} parent=5 // pred_region
        %s328 = ssub.s32 %s14, 2
        // Predicated region
        $region41: #{tpu_custom_call.1} parent=39 // pred_check
          %p329 = pneg %p90
        $region42: #{tpu_custom_call.1} parent=39 // pred_check_branch
          %331 = sbr.rel (%p329) target = $region44
        $region43: #{tpu_custom_call.1} parent=39 // pred_region
          %s332 = sand.u32 %s75, 1
          %s333 = scalar_lea.sflag [#allocation4], %s332
          %s334 = sand.u32 %s75, 1
          %s335 = smul.addr %s334, 96
          %s336 = scalar_lea.vmem [#allocation5], %s335
          %338 = dma.done %s333, 1536
        $region44: #{tpu_custom_call.1} parent=39 // pred_fallthru
          _
      $region40: #{tpu_custom_call.1} parent=5 // pred_fallthru
        _
    $region6: #{tpu_custom_call.1} parent=1 // loop_footer
      %s18 = sadd.s32 1, %s14
    $region7: #{tpu_custom_call.1} parent=1 // loop_footer_branch
      %13 = sbr.rel target = $region3
    $region8: #{tpu_custom_call.1} parent=1 // loop_exit
      _
    %339 = vsyncpa [#allocation3], 1
    %s340 = scalar_lea.sflag [#allocation3], 1
    %341 = vsyncpa %s340, 1
    %342 = vsyncpa [#allocation4], 1
    %s343 = scalar_lea.sflag [#allocation4], 1
    %344 = vsyncpa %s343, 1

</llo_original>
